<compile_context>
chip_gen: v7x
topology: tpu7x:2x2x1
jax: 0.10.0
libtpu: 0.0.40
codegen_flags: <defaults>
</compile_context>

<pallas_src>
from functools import partial

import jax
import jax.numpy as jnp
from jax.experimental import pallas as pl
from jax.experimental.pallas import tpu as pltpu

_LANES = 128
_SUBLANES = 8
_ROW_ALIGN = 32          # block-row granularity safe for f32/bf16/int8 packing
_MAX_BLOCK_ROWS = 2048   # 2048 * 128 * 4 B = 1 MiB per f32 input block


def _round_up(x, m):
    return ((x + m - 1) // m) * m


def _valid_mask(gblk, shape, block_elems, n_valid):
    """Mask of elements of the current block whose flat index is < n_valid."""
    row = jax.lax.broadcasted_iota(jnp.int32, shape, 0)
    lane = jax.lax.broadcasted_iota(jnp.int32, shape, 1)
    flat = gblk * block_elems + row * _LANES + lane
    return flat < n_valid


def _minmax_kernel(pred_ref, min_out, max_out, *, n_valid, block_elems, full_blocks):
    """Pass 1: per-split running (8,128) min/max of y_pred."""
    i = pl.program_id(0)          # split (parallel)
    j = pl.program_id(1)          # block within split (reduction)
    nj = pl.num_programs(1)
    gblk = i * nj + j             # global block index

    @pl.when(j == 0)
    def _init():
        min_out[...] = jnp.full(min_out.shape, jnp.inf, dtype=min_out.dtype)
        max_out[...] = jnp.full(max_out.shape, -jnp.inf, dtype=max_out.dtype)

    @pl.when(gblk < full_blocks)      # fully-valid block: no masking
    def _steady():
        p = pred_ref[...].astype(jnp.float32).reshape(-1, _SUBLANES, _LANES)
        min_out[...] = jnp.minimum(min_out[...], p.min(axis=0))
        max_out[...] = jnp.maximum(max_out[...], p.max(axis=0))

    @pl.when(gblk >= full_blocks)     # block contains padding: mask it
    def _tail():
        p = pred_ref[...].astype(jnp.float32)
        valid = _valid_mask(gblk, p.shape, block_elems, n_valid)
        pmin = jnp.where(valid, p, jnp.inf).reshape(-1, _SUBLANES, _LANES).min(axis=0)
        pmax = jnp.where(valid, p, -jnp.inf).reshape(-1, _SUBLANES, _LANES).max(axis=0)
        min_out[...] = jnp.minimum(min_out[...], pmin)
        max_out[...] = jnp.maximum(max_out[...], pmax)


def _sums_kernel(stats_ref, pred_ref, true_ref, inter_out, tsum_out, psum_out,
                 *, n_valid, block_elems, full_blocks):
    """Pass 2: normalize+round y_pred, accumulate (8,128) partial sums per split."""
    i = pl.program_id(0)
    j = pl.program_id(1)
    nj = pl.num_programs(1)
    gblk = i * nj + j

    @pl.when(j == 0)
    def _init():
        inter_out[...] = jnp.zeros(inter_out.shape, inter_out.dtype)
        tsum_out[...] = jnp.zeros(tsum_out.shape, tsum_out.dtype)
        psum_out[...] = jnp.zeros(psum_out.shape, psum_out.dtype)

    mn = stats_ref[0]    # global min of y_pred
    inv = stats_ref[1]   # 1 / (max - min), hoisted reciprocal

    @pl.when(gblk < full_blocks)      # fully-valid block: unmasked fast path
    def _steady():
        p = pred_ref[...].astype(jnp.float32)
        t = true_ref[...].astype(jnp.float32)
        q = jnp.round((p - mn) * inv)
        inter_out[...] += (t * q).reshape(-1, _SUBLANES, _LANES).sum(axis=0)
        tsum_out[...] += t.reshape(-1, _SUBLANES, _LANES).sum(axis=0)
        psum_out[...] += q.reshape(-1, _SUBLANES, _LANES).sum(axis=0)

    @pl.when(gblk >= full_blocks)     # block contains padding: mask y_pred only
    def _tail():
        p = pred_ref[...].astype(jnp.float32)
        t = true_ref[...].astype(jnp.float32)   # padding of y_true is zero already
        valid = _valid_mask(gblk, p.shape, block_elems, n_valid)
        q = jnp.where(valid, jnp.round((p - mn) * inv), 0.0)
        inter_out[...] += (t * q).reshape(-1, _SUBLANES, _LANES).sum(axis=0)
        tsum_out[...] += t.reshape(-1, _SUBLANES, _LANES).sum(axis=0)
        psum_out[...] += q.reshape(-1, _SUBLANES, _LANES).sum(axis=0)


def dice_coef(y_pred, y_true, smooth=1.0):
    """Matches DiceCoef.forward(y_pred, y_true, smooth) from the PyTorch module."""
    n = int(y_pred.size)
    assert int(y_true.size) == n

    # Cast happens in-kernel; only promote non-float dtypes (e.g. bool masks)
    # so VMEM tiles are well-formed.
    if not jnp.issubdtype(y_pred.dtype, jnp.floating):
        y_pred = y_pred.astype(jnp.float32)
    if not jnp.issubdtype(y_true.dtype, jnp.floating):
        y_true = y_true.astype(jnp.float32)

    rows = pl.cdiv(n, _LANES)
    block_rows = min(_MAX_BLOCK_ROWS, _round_up(rows, _ROW_ALIGN))
    block_elems = block_rows * _LANES
    num_blocks = pl.cdiv(rows, block_rows)
    n_splits = 2 if num_blocks >= 2 else 1          # 2 TCs on v7x; harmless elsewhere
    blocks_per_split = pl.cdiv(num_blocks, n_splits)
    total_blocks = n_splits * blocks_per_split
    padded_rows = total_blocks * block_rows
    full_blocks = n // block_elems                   # blocks with zero padding (static)

    def _prep(x):
        flat = jnp.ravel(x)
        pad = padded_rows * _LANES - n
        if pad:
            flat = jnp.pad(flat, (0, pad))
        return flat.reshape(padded_rows, _LANES)

    p2d = _prep(y_pred)
    t2d = _prep(y_true)

    grid = (n_splits, blocks_per_split)
    bps = blocks_per_split
    data_spec_p = pl.BlockSpec((block_rows, _LANES), lambda i, j: (i * bps + j, 0))
    data_spec_t = pl.BlockSpec((block_rows, _LANES), lambda i, j: (i * bps + j, 0))
    acc_spec = pl.BlockSpec((_SUBLANES, _LANES), lambda i, j: (i, 0))
    acc_shape = jax.ShapeDtypeStruct((n_splits * _SUBLANES, _LANES), jnp.float32)
    cparams = pltpu.CompilerParams(dimension_semantics=("parallel", "arbitrary"))

    # Pass 1: global min/max of y_pred (vectorized per-split accumulators).
    min_p, max_p = pl.pallas_call(
        partial(_minmax_kernel, n_valid=n, block_elems=block_elems,
                full_blocks=full_blocks),
        grid=grid,
        in_specs=[data_spec_p],
        out_specs=(acc_spec, acc_spec),
        out_shape=(acc_shape, acc_shape),
        compiler_params=cparams,
    )(p2d)

    mn = jnp.min(min_p)
    mx = jnp.max(max_p)
    stats = jnp.stack([mn, 1.0 / (mx - mn)]).astype(jnp.float32)

    # Pass 2: normalize+round y_pred, reduce the three sums per split.
    inter_p, tsum_p, psum_p = pl.pallas_call(
        partial(_sums_kernel, n_valid=n, block_elems=block_elems,
                full_blocks=full_blocks),
        grid=grid,
        in_specs=[pl.BlockSpec(memory_space=pltpu.SMEM), data_spec_p, data_spec_t],
        out_specs=(acc_spec, acc_spec, acc_spec),
        out_shape=(acc_shape, acc_shape, acc_shape),
        compiler_params=cparams,
    )(stats, p2d, t2d)

    intersection = jnp.sum(inter_p)
    dice = (2.0 * intersection + smooth) / (jnp.sum(tsum_p) + jnp.sum(psum_p) + smooth)
    return dice


def _dice_ref(y_pred, y_true, smooth=1.0):
    """Pure-JAX reference mirroring the PyTorch forward."""
    t = jnp.ravel(y_true).astype(jnp.float32)
    p = jnp.ravel(y_pred).astype(jnp.float32)
    p = jnp.round((p - p.min()) / (p.max() - p.min()))
    inter = jnp.sum(t * p)
    return (2.0 * inter + smooth) / (jnp.sum(t) + jnp.sum(p) + smooth)


if __name__ == "__main__":
    key = jax.random.PRNGKey(0)
    k1, k2 = jax.random.split(key)
    # NCHW-shaped segmentation logits/mask; the op flattens so layout is moot.
    y_pred = jax.random.uniform(k1, (2, 4, 16, 16), dtype=jnp.float32)
    y_true = (jax.random.uniform(k2, (2, 4, 16, 16)) > 0.5).astype(jnp.float32)

    out = dice_coef(y_pred, y_true)
    jax.block_until_ready(out)

    ref = _dice_ref(y_pred, y_true)
    assert jnp.allclose(out, ref, rtol=1e-6, atol=1e-6), (out, ref)
    print("KERNEL_OK")
</pallas_src>

<mosaic_0001>
module attributes {stable_mosaic.version = 11 : i64} {
  func.func @_minmax_kernel(%arg0: i32, %arg1: i32, %arg2: memref<32x128xf32, #tpu.memory_space<vmem>>, %arg3: memref<8x128xf32, #tpu.memory_space<vmem>>, %arg4: memref<8x128xf32, #tpu.memory_space<vmem>>) attributes {dimension_semantics = [#tpu.dimension_semantics<parallel>, #tpu.dimension_semantics<arbitrary>], iteration_bounds = array<i64: 1, 1>, scalar_prefetch = 0 : i64, scratch_operands = 0 : i64, tpu.core_type = #tpu.core_type<tc>, window_params = [{transform_indices = @transform_0, window_bounds = array<i64: 32, 128>}, {transform_indices = @transform_1, window_bounds = array<i64: 8, 128>}, {transform_indices = @transform_2, window_bounds = array<i64: 8, 128>}]} {
    %c1_i32 = arith.constant 1 : i32
    %0 = arith.muli %arg0, %c1_i32 : i32
    %1 = arith.addi %0, %arg1 : i32
    %c0_i32 = arith.constant 0 : i32
    %2 = arith.cmpi eq, %arg1, %c0_i32 : i32
    %3 = arith.extui %2 : i1 to i32
    %c0_i32_0 = arith.constant 0 : i32
    %4 = arith.cmpi ne, %3, %c0_i32_0 : i32
    scf.if %4 {
      %cst = arith.constant 0x7F800000 : f32
      %11 = vector.broadcast %cst : f32 to vector<8x128xf32>
      %c0 = arith.constant 0 : index
      %c0_5 = arith.constant 0 : index
      %12 = vector.load %arg3[%c0, %c0_5] : memref<8x128xf32, #tpu.memory_space<vmem>>, vector<8x128xf32>
      tpu.vector_store %arg3[%c0, %c0_5], %11 {strides = array<i32>} : memref<8x128xf32, #tpu.memory_space<vmem>>, vector<8x128xf32>,
      %cst_6 = arith.constant 0xFF800000 : f32
      %13 = vector.broadcast %cst_6 : f32 to vector<8x128xf32>
      %c0_7 = arith.constant 0 : index
      %c0_8 = arith.constant 0 : index
      %14 = vector.load %arg4[%c0_7, %c0_8] : memref<8x128xf32, #tpu.memory_space<vmem>>, vector<8x128xf32>
      tpu.vector_store %arg4[%c0_7, %c0_8], %13 {strides = array<i32>} : memref<8x128xf32, #tpu.memory_space<vmem>>, vector<8x128xf32>,
    } else {
    }
    %c0_i32_1 = arith.constant 0 : i32
    %5 = arith.cmpi slt, %1, %c0_i32_1 : i32
    %6 = arith.extui %5 : i1 to i32
    %c0_i32_2 = arith.constant 0 : i32
    %7 = arith.cmpi ne, %6, %c0_i32_2 : i32
    scf.if %7 {
      %c0 = arith.constant 0 : index
      %c0_5 = arith.constant 0 : index
      %11 = vector.load %arg2[%c0, %c0_5] : memref<32x128xf32, #tpu.memory_space<vmem>>, vector<32x128xf32>
      %12 = vector.shape_cast %11 : vector<32x128xf32> to vector<4x8x128xf32>
      %c0_6 = arith.constant 0 : index
      %c0_7 = arith.constant 0 : index
      %13 = vector.load %arg3[%c0_6, %c0_7] : memref<8x128xf32, #tpu.memory_space<vmem>>, vector<8x128xf32>
      %cst = arith.constant dense<0x7F800000> : vector<8x128xf32>
      %14 = vector.multi_reduction <minimumf>, %12, %cst [0] : vector<4x8x128xf32> to vector<8x128xf32>
      %15 = arith.minimumf %13, %14 : vector<8x128xf32>
      %c0_8 = arith.constant 0 : index
      %c0_9 = arith.constant 0 : index
      %16 = vector.load %arg3[%c0_8, %c0_9] : memref<8x128xf32, #tpu.memory_space<vmem>>, vector<8x128xf32>
      tpu.vector_store %arg3[%c0_8, %c0_9], %15 {strides = array<i32>} : memref<8x128xf32, #tpu.memory_space<vmem>>, vector<8x128xf32>,
      %c0_10 = arith.constant 0 : index
      %c0_11 = arith.constant 0 : index
      %17 = vector.load %arg4[%c0_10, %c0_11] : memref<8x128xf32, #tpu.memory_space<vmem>>, vector<8x128xf32>
      %cst_12 = arith.constant dense<0xFF800000> : vector<8x128xf32>
      %18 = vector.multi_reduction <maximumf>, %12, %cst_12 [0] : vector<4x8x128xf32> to vector<8x128xf32>
      %19 = arith.maximumf %17, %18 : vector<8x128xf32>
      %c0_13 = arith.constant 0 : index
      %c0_14 = arith.constant 0 : index
      %20 = vector.load %arg4[%c0_13, %c0_14] : memref<8x128xf32, #tpu.memory_space<vmem>>, vector<8x128xf32>
      tpu.vector_store %arg4[%c0_13, %c0_14], %19 {strides = array<i32>} : memref<8x128xf32, #tpu.memory_space<vmem>>, vector<8x128xf32>,
    } else {
    }
    %c0_i32_3 = arith.constant 0 : i32
    %8 = arith.cmpi sge, %1, %c0_i32_3 : i32
    %9 = arith.extui %8 : i1 to i32
    %c0_i32_4 = arith.constant 0 : i32
    %10 = arith.cmpi ne, %9, %c0_i32_4 : i32
    scf.if %10 {
      %c0 = arith.constant 0 : index
      %c0_5 = arith.constant 0 : index
      %11 = vector.load %arg2[%c0, %c0_5] : memref<32x128xf32, #tpu.memory_space<vmem>>, vector<32x128xf32>
      %12 = tpu.iota {dimensions = array<i32: 0>} : vector<32x128xi32>
      %13 = tpu.iota {dimensions = array<i32: 1>} : vector<32x128xi32>
      %c4096_i32 = arith.constant 4096 : i32
      %14 = arith.muli %1, %c4096_i32 : i32
      %c128_i32 = arith.constant 128 : i32
      %15 = vector.broadcast %c128_i32 : i32 to vector<32x128xi32>
      %16 = arith.muli %12, %15 : vector<32x128xi32>
      %17 = vector.broadcast %14 : i32 to vector<32x128xi32>
      %18 = arith.addi %17, %16 : vector<32x128xi32>
      %19 = arith.addi %18, %13 : vector<32x128xi32>
      %c2048_i32 = arith.constant 2048 : i32
      %20 = vector.broadcast %c2048_i32 : i32 to vector<32x128xi32>
      %21 = arith.cmpi slt, %19, %20 : vector<32x128xi32>
      %cst = arith.constant 0x7F800000 : f32
      %22 = vector.broadcast %cst : f32 to vector<32x128xf32>
      %23 = arith.select %21, %11, %22 : vector<32x128xi1>, vector<32x128xf32>
      %24 = vector.shape_cast %23 : vector<32x128xf32> to vector<4x8x128xf32>
      %cst_6 = arith.constant dense<0x7F800000> : vector<8x128xf32>
      %25 = vector.multi_reduction <minimumf>, %24, %cst_6 [0] : vector<4x8x128xf32> to vector<8x128xf32>
      %cst_7 = arith.constant 0xFF800000 : f32
      %26 = vector.broadcast %cst_7 : f32 to vector<32x128xf32>
      %27 = arith.select %21, %11, %26 : vector<32x128xi1>, vector<32x128xf32>
      %28 = vector.shape_cast %27 : vector<32x128xf32> to vector<4x8x128xf32>
      %cst_8 = arith.constant dense<0xFF800000> : vector<8x128xf32>
      %29 = vector.multi_reduction <maximumf>, %28, %cst_8 [0] : vector<4x8x128xf32> to vector<8x128xf32>
      %c0_9 = arith.constant 0 : index
      %c0_10 = arith.constant 0 : index
      %30 = vector.load %arg3[%c0_9, %c0_10] : memref<8x128xf32, #tpu.memory_space<vmem>>, vector<8x128xf32>
      %31 = arith.minimumf %30, %25 : vector<8x128xf32>
      %c0_11 = arith.constant 0 : index
      %c0_12 = arith.constant 0 : index
      %32 = vector.load %arg3[%c0_11, %c0_12] : memref<8x128xf32, #tpu.memory_space<vmem>>, vector<8x128xf32>
      tpu.vector_store %arg3[%c0_11, %c0_12], %31 {strides = array<i32>} : memref<8x128xf32, #tpu.memory_space<vmem>>, vector<8x128xf32>,
      %c0_13 = arith.constant 0 : index
      %c0_14 = arith.constant 0 : index
      %33 = vector.load %arg4[%c0_13, %c0_14] : memref<8x128xf32, #tpu.memory_space<vmem>>, vector<8x128xf32>
      %34 = arith.maximumf %33, %29 : vector<8x128xf32>
      %c0_15 = arith.constant 0 : index
      %c0_16 = arith.constant 0 : index
      %35 = vector.load %arg4[%c0_15, %c0_16] : memref<8x128xf32, #tpu.memory_space<vmem>>, vector<8x128xf32>
      tpu.vector_store %arg4[%c0_15, %c0_16], %34 {strides = array<i32>} : memref<8x128xf32, #tpu.memory_space<vmem>>, vector<8x128xf32>,
    } else {
    }
    return
  }
  func.func @transform_0(%arg0: i32, %arg1: i32) -> (i32, i32) {
    %c1_i32 = arith.constant 1 : i32
    %0 = arith.muli %arg0, %c1_i32 : i32
    %1 = arith.addi %0, %arg1 : i32
    %c0_i32 = arith.constant 0 : i32
    %c0_i32_0 = arith.constant 0 : i32
    return %1, %c0_i32 : i32, i32
  }
  func.func @transform_1(%arg0: i32, %arg1: i32) -> (i32, i32) {
    %c0_i32 = arith.constant 0 : i32
    %c0_i32_0 = arith.constant 0 : i32
    return %arg0, %c0_i32 : i32, i32
  }
  func.func @transform_2(%arg0: i32, %arg1: i32) -> (i32, i32) {
    %c0_i32 = arith.constant 0 : i32
    %c0_i32_0 = arith.constant 0 : i32
    return %arg0, %c0_i32 : i32, i32
  }
}

</mosaic_0001>

<llo_original>
// kernel: tpu_custom_call.1
$region0: #{tpu_custom_call.1}
  #allocation0 [shape = 'u32[]', space=smem, size = 0x4, offset = 0x4, fixed_abs, tag = 'smem constant byte address 0x4 - core index']
  #allocation1 [shape = 'u32[144,128]{1,0:T(1,128)}', space=vmem, size = 0x12000, scoped, tag = 'internal scratch']
  %s0 = inlined_call_operand.hbm [shape: f32[32,128], index: 0, kind: input, shape index: {}]
  %s1 = inlined_call_operand.hbm [shape: f32[8,128], index: 1, kind: output, shape index: {0}]
  %s2 = inlined_call_operand.hbm [shape: f32[8,128], index: 2, kind: output, shape index: {1}]
  %3 = xla_tuple %s1, %s2
  %s4 = sld [smem:[#allocation0]]
  $region38: #{tpu_custom_call.1} parent=0
    _
  %s6 = ssub.s32 1, %s4
  %s7 = scalar_select 0, %s6, %s4
  $region1: #{tpu_custom_call.1} parent=0
    #allocation2 [shape = 'u8[16384]{0}', space=vmem, size = 0x4000, scoped, tag = 'input window, operand 0, single buffered']
    #allocation3 [shape = 's32[1]{0}', space=sflag, size = 0x4, scoped, tag = 'scoped memory for tpu_custom_call.1']
    #allocation4 [shape = 's32[1]{0}', space=sflag, size = 0x4, scoped, tag = 'scoped memory for tpu_custom_call.1']
    #allocation5 [shape = 'u8[4096]{0}', space=vmem, size = 0x1000, scoped, tag = 'output window, operand 0, single buffered']
    #allocation6 [shape = 'u8[4096]{0}', space=vmem, size = 0x1000, scoped, tag = 'output window, operand 1, single buffered']
    #allocation7 [shape = 's32[1]{0}', space=sflag, size = 0x4, scoped, tag = 'scoped memory for tpu_custom_call.1']
    %8 = vsyncpa [#allocation3], 0
    %9 = vsyncpa [#allocation4], 0
    %10 = vsyncpa [#allocation7], 0
    // Predicated region
    $region2: #{tpu_custom_call.1} parent=1 // pred_check
      _
    $region3: #{tpu_custom_call.1} parent=1 // pred_check_branch
      %12 = sbr.rel (0) target = $region5
    $region4: #{tpu_custom_call.1} parent=1 // pred_region
      %s13 = sadd.s32 0, 0
      %s14 = smul.u32 4, %s13
      %s16 = ssub.s32 512, 512
      %17 = vsyncadd [#allocation3], %s16
      %s18 = smul.addr %s14, 128
      %s19 = scalar_lea.hbm %s0, %s18
      %s20 = sshll.u32 [#allocation2], 4
      %s21 = int_to_ptr.vmem [resolvable:$true] %s20
      %26 = dma.hbm_to_vmem [thread:$0]  %s19, 512, %s21, [#allocation3], 128, 128, 8
    $region5: #{tpu_custom_call.1} parent=1 // pred_fallthru
      _
    // Predicated region
    $region6: #{tpu_custom_call.1} parent=1 // pred_check
      _
    $region7: #{tpu_custom_call.1} parent=1 // pred_check_branch
      %28 = sbr.rel (0) target = $region9
    $region8: #{tpu_custom_call.1} parent=1 // pred_region
      %29 = dma.done [#allocation3], 512
    $region9: #{tpu_custom_call.1} parent=1 // pred_fallthru
      _
    %s30 = sadd.s32 0, 0
    %s31 = smul.u32 4, %s30
    %s32 = sadd.s32 0, 0
    %p33 = scmp.eq.s32.totalorder 0, 0
    // Predicated region
    $region10: #{tpu_custom_call.1} parent=1 // pred_check
      %p34 = pneg %p33
    $region11: #{tpu_custom_call.1} parent=1 // pred_check_branch
      %36 = sbr.rel (%p34) target = $region13
    $region12: #{tpu_custom_call.1} parent=1 // pred_region
      %37 = vst [vmem:[#allocation5] sm:$0xff] inf
      %38 = vst [vmem:[#allocation6] sm:$0xff] -inf
    $region13: #{tpu_custom_call.1} parent=1 // pred_fallthru
      _
    %p39 = scmp.lt.s32.totalorder %s32, 0
    // Predicated region
    $region14: #{tpu_custom_call.1} parent=1 // pred_check
      %p40 = pneg %p39
    $region15: #{tpu_custom_call.1} parent=1 // pred_check_branch
      %42 = sbr.rel (%p40) target = $region17
    $region16: #{tpu_custom_call.1} parent=1 // pred_region
      %v43 = vld [vmem:[#allocation2] sm:$0xff]
      %v44 = vld [vmem:[#allocation2 + $0x8] sm:$0xff]
      %v45 = vld [vmem:[#allocation2 + $0x10] sm:$0xff]
      %v46 = vld [vmem:[#allocation2 + $0x18] sm:$0xff]
      %v47 = vld [vmem:[#allocation5] sm:$0xff]
      %v48 = vmin.f32 %v43, %v44
      %v49 = vmin.f32 %v45, %v46
      %v50 = vmin.f32 %v48, %v49
      %v51 = vmin.f32 %v47, %v50
      %52 = vst [vmem:[#allocation5] sm:$0xff] %v51
      %v53 = vld [vmem:[#allocation6] sm:$0xff]
      %v54 = vmax.f32 %v43, %v44
      %v55 = vmax.f32 %v45, %v46
      %v56 = vmax.f32 %v54, %v55
      %v57 = vmax.f32 %v53, %v56
      %58 = vst [vmem:[#allocation6] sm:$0xff] %v57
    $region17: #{tpu_custom_call.1} parent=1 // pred_fallthru
      _
    %p59 = scmp.ge.s32.totalorder %s32, 0
    // Predicated region
    $region18: #{tpu_custom_call.1} parent=1 // pred_check
      %p60 = pneg %p59
    $region19: #{tpu_custom_call.1} parent=1 // pred_check_branch
      %62 = sbr.rel (%p60) target = $region21
    $region20: #{tpu_custom_call.1} parent=1 // pred_region
      %v63 = vld [vmem:[#allocation2] sm:$0xff]
      %v64 = vld [vmem:[#allocation2 + $0x8] sm:$0xff]
      %v65 = vld [vmem:[#allocation2 + $0x10] sm:$0xff]
      %v66 = vld [vmem:[#allocation2 + $0x18] sm:$0xff]
      %v67 = vlaneseq
      %v68 = vshrl.u32 %v67, 7
      %v69 = vadd.s32 %v68, 8
      %v70 = vadd.s32 %v68, 16
      %v71 = vadd.s32 %v68, 24
      %v72 = vlaneseq
      %v73 = vand.u32 %v72, 127
      %s74 = smul.u32 %s32, 4096
      %v75 = vmul.u32 %v68, 128
      %v76 = vmul.u32 %v69, 128
      %v77 = vmul.u32 %v70, 128
      %v78 = vmul.u32 %v71, 128
      %v79 = vstv %s74
      %v80 = vadd.s32 %v79, %v75
      %v81 = vadd.s32 %v79, %v76
      %v82 = vadd.s32 %v79, %v77
      %v83 = vadd.s32 %v79, %v78
      %v84 = vadd.s32 %v80, %v73
      %v85 = vadd.s32 %v81, %v73
      %v86 = vadd.s32 %v82, %v73
      %v87 = vadd.s32 %v83, %v73
      %vm88 = vcmp.lt.s32.totalorder %v84, 2048
      %vm89 = vcmp.lt.s32.totalorder %v85, 2048
      %vm90 = vcmp.lt.s32.totalorder %v86, 2048
      %vm91 = vcmp.lt.s32.totalorder %v87, 2048
      %v92 = vsel %vm88, %v63, inf
      %v93 = vsel %vm89, %v64, inf
      %v94 = vsel %vm90, %v65, inf
      %v95 = vsel %vm91, %v66, inf
      %v96 = vmin.f32 %v92, %v93
      %v97 = vmin.f32 %v94, %v95
      %v98 = vmin.f32 %v96, %v97
      %v99 = vsel %vm88, %v63, -inf
      %v100 = vsel %vm89, %v64, -inf
      %v101 = vsel %vm90, %v65, -inf
      %v102 = vsel %vm91, %v66, -inf
      %v103 = vmax.f32 %v99, %v100
      %v104 = vmax.f32 %v101, %v102
      %v105 = vmax.f32 %v103, %v104
      %v106 = vld [vmem:[#allocation5] sm:$0xff]
      %v107 = vmin.f32 %v106, %v98
      %108 = vst [vmem:[#allocation5] sm:$0xff] %v107
      %v109 = vld [vmem:[#allocation6] sm:$0xff]
      %v110 = vmax.f32 %v109, %v105
      %111 = vst [vmem:[#allocation6] sm:$0xff] %v110
    $region21: #{tpu_custom_call.1} parent=1 // pred_fallthru
      _
    // Predicated region
    $region22: #{tpu_custom_call.1} parent=1 // pred_check
      _
    $region23: #{tpu_custom_call.1} parent=1 // pred_check_branch
      %113 = sbr.rel (0) target = $region25
    $region24: #{tpu_custom_call.1} parent=1 // pred_region
      %s115 = ssub.s32 128, 128
      %116 = vsyncadd [#allocation4], %s115
      %s118 = sshll.u32 [#allocation5], 4
      %s119 = int_to_ptr.vmem [resolvable:$true] %s118
      %121 = dma.vmem_to_hbm [thread:$0]  %s119, 128, %s1, [#allocation4]
    $region25: #{tpu_custom_call.1} parent=1 // pred_fallthru
      _
    // Predicated region
    $region26: #{tpu_custom_call.1} parent=1 // pred_check
      _
    $region27: #{tpu_custom_call.1} parent=1 // pred_check_branch
      %123 = sbr.rel (0) target = $region29
    $region28: #{tpu_custom_call.1} parent=1 // pred_region
      %s125 = ssub.s32 128, 128
      %126 = vsyncadd [#allocation7], %s125
      %s128 = sshll.u32 [#allocation6], 4
      %s129 = int_to_ptr.vmem [resolvable:$true] %s128
      %131 = dma.vmem_to_hbm [thread:$0]  %s129, 128, %s2, [#allocation7]
    $region29: #{tpu_custom_call.1} parent=1 // pred_fallthru
      _
    // Predicated region
    $region30: #{tpu_custom_call.1} parent=1 // pred_check
      _
    $region31: #{tpu_custom_call.1} parent=1 // pred_check_branch
      %133 = sbr.rel (0) target = $region33
    $region32: #{tpu_custom_call.1} parent=1 // pred_region
      %134 = dma.done [#allocation4], 128
    $region33: #{tpu_custom_call.1} parent=1 // pred_fallthru
      _
    // Predicated region
    $region34: #{tpu_custom_call.1} parent=1 // pred_check
      _
    $region35: #{tpu_custom_call.1} parent=1 // pred_check_branch
      %136 = sbr.rel (0) target = $region37
    $region36: #{tpu_custom_call.1} parent=1 // pred_region
      %137 = dma.done [#allocation7], 128
    $region37: #{tpu_custom_call.1} parent=1 // pred_fallthru
      _
    %138 = vsyncpa [#allocation3], 1
    %139 = vsyncpa [#allocation4], 1
    %140 = vsyncpa [#allocation7], 1

</llo_original>
